<compile_context>
chip_gen: v7x
topology: tpu7x:2x2x1
jax: 0.10.0
libtpu: 0.0.40
codegen_flags: <defaults>
</compile_context>

<pallas_src>
import functools

import jax
import jax.numpy as jnp
from jax.experimental import pallas as pl
from jax.experimental.pallas import tpu as pltpu

# Problem sizes (synthetic "breath_block" = single 3x3 conv + ReLU).
B = 2        # batch
C_IN = 4     # input channels
H = 16       # spatial height
W = 16       # spatial width
C_OUT = 32   # breath_block.n_out_filters
KH = KW = 3  # conv kernel
N_CLS = 2    # linear_final output features


def _cnn_linear_kernel(patch_ref, wc_ref, bc_ref, wl_ref, bl_ref, o_ref,
                       *, b, hw, c_out):
    """Fused conv3x3(pad=1) + ReLU + global-avg-pool + linear for the WHOLE batch.

    patch_ref: (b*hw, KH*KW*c_in)  im2col patches, bf16 (tap-major, channel-minor cols)
    wc_ref   : (KH*KW*c_in, c_out) pre-packed conv weight, bf16 (matching row order)
    bc_ref   : (1, c_out)          conv bias, f32
    wl_ref   : (c_out, n_cls)      final linear weight, transposed and pre-scaled by 1/hw, f32
    bl_ref   : (1, n_cls)          final linear bias, f32
    o_ref    : (b, n_cls)          logits, f32
    """
    # Conv as a single MXU matmul: bf16 inputs, f32 accumulate.
    acc = jnp.dot(patch_ref[...], wc_ref[...],
                  preferred_element_type=jnp.float32)          # (b*hw, c_out) f32

    # Bias + ReLU (breath_block activation) in f32 on the VPU.
    acc = jnp.maximum(acc + bc_ref[...], 0.0)

    # adaptive_avg_pool2d((1, 1)): per-batch column SUMS (XLU reduce); the
    # 1/(h*w) mean scale is folded into wl_ref by the wrapper.
    # (b*hw, c_out) -> (b, hw, c_out) is a tile-aligned sublane split (hw % 8 == 0).
    sums = jnp.sum(acc.reshape(b, hw, c_out), axis=1)          # (b, c_out) f32

    # linear_final (tiny f32 matmul) + bias.
    logits = jnp.dot(sums, wl_ref[...],
                     preferred_element_type=jnp.float32) + bl_ref[...]
    o_ref[...] = logits.astype(o_ref.dtype)


def cnn_linear_network_2d(x_nchw, metadata, conv_w_oihw, conv_b, lin_w, lin_b):
    """Forward pass. `metadata` is accepted (to match the torch signature) but unused."""
    del metadata  # unused by the PyTorch module's forward as well
    b, c_in, h, w = x_nchw.shape
    c_out, _, kh, kw = conv_w_oihw.shape
    n_cls = lin_w.shape[0]

    # ---- Layout plumbing in plain JAX (no compute hoisted) -------------------
    # NCHW -> NHWC, zero-pad spatially (Conv2d padding=1).
    x_nhwc = jnp.transpose(x_nchw, (0, 2, 3, 1)).astype(jnp.float32)
    x_pad = jnp.pad(x_nhwc, ((0, 0), (1, 1), (1, 1), (0, 0)))            # (B, H+2, W+2, Cin)

    # im2col: 9 shifted views concatenated along the channel axis
    # (tap-major, channel-minor), then flattened to a lane-friendly 2-D slab.
    cols = [x_pad[:, i:i + h, j:j + w, :] for i in range(kh) for j in range(kw)]
    patch = jnp.concatenate(cols, axis=-1).reshape(b * h * w, kh * kw * c_in)
    patch = patch.astype(jnp.bfloat16)                                   # (B*H*W, 36)

    # Conv weight: OIHW -> HWIO -> (KH*KW*Cin, Cout), bf16 for the MXU.
    w_packed = jnp.transpose(conv_w_oihw, (2, 3, 1, 0)) \
                  .reshape(kh * kw * c_in, c_out).astype(jnp.bfloat16)   # (36, Cout)
    conv_b_2d = conv_b.reshape(1, c_out).astype(jnp.float32)

    # Final linear: transpose and fold the 1/(H*W) pooling scale into the weight.
    lin_w_scaled = (jnp.transpose(lin_w, (1, 0)) / float(h * w)).astype(jnp.float32)  # (Cout, n_cls)
    lin_b_2d = lin_b.reshape(1, n_cls).astype(jnp.float32)

    kernel = functools.partial(_cnn_linear_kernel, b=b, hw=h * w, c_out=c_out)

    # Collapsed grid: one invocation over the full (tiny) problem; everything
    # fits comfortably in VMEM on v5e / v6e / v7x.
    return pl.pallas_call(
        kernel,
        out_shape=jax.ShapeDtypeStruct((b, n_cls), jnp.float32),
        grid=(1,),
        in_specs=[
            pl.BlockSpec((b * h * w, kh * kw * c_in), lambda i: (0, 0)),
            pl.BlockSpec((kh * kw * c_in, c_out), lambda i: (0, 0)),
            pl.BlockSpec((1, c_out), lambda i: (0, 0)),
            pl.BlockSpec((c_out, n_cls), lambda i: (0, 0)),
            pl.BlockSpec((1, n_cls), lambda i: (0, 0)),
        ],
        out_specs=pl.BlockSpec((b, n_cls), lambda i: (0, 0)),
        compiler_params=pltpu.CompilerParams(
            dimension_semantics=("arbitrary",)),
    )(patch, w_packed, conv_b_2d, lin_w_scaled, lin_b_2d)


def _reference_forward(x_nchw, conv_w_oihw, conv_b, lin_w, lin_b):
    """Pure-JAX f32 reference mirroring the PyTorch module (NCHW)."""
    feat = jax.lax.conv_general_dilated(
        x_nchw, conv_w_oihw, window_strides=(1, 1), padding=((1, 1), (1, 1)),
        dimension_numbers=("NCHW", "OIHW", "NCHW"))
    feat = jnp.maximum(feat + conv_b[None, :, None, None], 0.0)
    pooled = jnp.mean(feat, axis=(2, 3))              # adaptive_avg_pool2d((1,1)) + flatten
    return pooled @ lin_w.T + lin_b                    # linear_final


if __name__ == "__main__":
    key = jax.random.PRNGKey(0)
    k_x, k_cw, k_cb, k_lw, k_lb = jax.random.split(key, 5)

    # Deterministic synthetic parameters (shapes implied by the module's __init__).
    x = jax.random.normal(k_x, (B, C_IN, H, W), dtype=jnp.float32)
    metadata = jnp.zeros((B, 1), dtype=jnp.float32)    # unused by forward, kept for parity
    conv_w = jax.random.normal(k_cw, (C_OUT, C_IN, KH, KW), dtype=jnp.float32) * 0.1
    conv_b = jax.random.normal(k_cb, (C_OUT,), dtype=jnp.float32) * 0.1
    lin_w = jax.random.normal(k_lw, (N_CLS, C_OUT), dtype=jnp.float32) * 0.1
    lin_b = jax.random.normal(k_lb, (N_CLS,), dtype=jnp.float32) * 0.1

    out = cnn_linear_network_2d(x, metadata, conv_w, conv_b, lin_w, lin_b)
    out = jax.block_until_ready(out)

    ref = _reference_forward(x, conv_w, conv_b, lin_w, lin_b)
    assert out.shape == (B, N_CLS), out.shape
    # Tolerance accounts for bf16 MXU inputs (f32 accumulate) on the conv matmul.
    assert jnp.allclose(out, ref, atol=3e-2, rtol=3e-2), (out, ref)

    print("KERNEL_OK")
</pallas_src>

<mosaic_0001>
module attributes {stable_mosaic.version = 11 : i64} {
  func.func @_cnn_linear_kernel(%arg0: i32, %arg1: memref<512x36xbf16, #tpu.memory_space<vmem>>, %arg2: memref<36x32xbf16, #tpu.memory_space<vmem>>, %arg3: memref<1x32xf32, #tpu.memory_space<vmem>>, %arg4: memref<32x2xf32, #tpu.memory_space<vmem>>, %arg5: memref<1x2xf32, #tpu.memory_space<vmem>>, %arg6: memref<2x2xf32, #tpu.memory_space<vmem>>) attributes {dimension_semantics = [#tpu.dimension_semantics<arbitrary>], iteration_bounds = array<i64: 1>, scalar_prefetch = 0 : i64, scratch_operands = 0 : i64, tpu.core_type = #tpu.core_type<tc>, window_params = [{pipeline_mode = #tpu.pipeline_mode<synchronous>, transform_indices = @transform_0, window_bounds = array<i64: 512, 36>}, {pipeline_mode = #tpu.pipeline_mode<synchronous>, transform_indices = @transform_1, window_bounds = array<i64: 36, 32>}, {pipeline_mode = #tpu.pipeline_mode<synchronous>, transform_indices = @transform_2, window_bounds = array<i64: 1, 32>}, {pipeline_mode = #tpu.pipeline_mode<synchronous>, transform_indices = @transform_3, window_bounds = array<i64: 32, 2>}, {pipeline_mode = #tpu.pipeline_mode<synchronous>, transform_indices = @transform_4, window_bounds = array<i64: 1, 2>}, {pipeline_mode = #tpu.pipeline_mode<synchronous>, transform_indices = @transform_5, window_bounds = array<i64: 2, 2>}]} {
    %c0 = arith.constant 0 : index
    %c0_0 = arith.constant 0 : index
    %0 = vector.load %arg1[%c0, %c0_0] : memref<512x36xbf16, #tpu.memory_space<vmem>>, vector<512x36xbf16>
    %c0_1 = arith.constant 0 : index
    %c0_2 = arith.constant 0 : index
    %1 = vector.load %arg2[%c0_1, %c0_2] : memref<36x32xbf16, #tpu.memory_space<vmem>>, vector<36x32xbf16>
    %cst = arith.constant dense<0.000000e+00> : vector<512x32xf32>
    %2 = tpu.matmul %0, %1, %cst {dimension_numbers = #tpu.dot_dimension_numbers<[1], [0], [0], [1], [0, 0, 1, 1], [], []>} : vector<512x36xbf16>, vector<36x32xbf16>, vector<512x32xf32> -> vector<512x32xf32>
    %c0_3 = arith.constant 0 : index
    %c0_4 = arith.constant 0 : index
    %3 = vector.load %arg3[%c0_3, %c0_4] : memref<1x32xf32, #tpu.memory_space<vmem>>, vector<1x32xf32>
    %4 = vector.broadcast %3 : vector<1x32xf32> to vector<512x32xf32>
    %5 = arith.addf %2, %4 : vector<512x32xf32>
    %cst_5 = arith.constant 0.000000e+00 : f32
    %6 = vector.broadcast %cst_5 : f32 to vector<512x32xf32>
    %7 = arith.maximumf %5, %6 : vector<512x32xf32>
    %8 = vector.shape_cast %7 : vector<512x32xf32> to vector<2x256x32xf32>
    %cst_6 = arith.constant dense<0.000000e+00> : vector<2x32xf32>
    %9 = vector.multi_reduction <add>, %8, %cst_6 [1] : vector<2x256x32xf32> to vector<2x32xf32>
    %c0_7 = arith.constant 0 : index
    %c0_8 = arith.constant 0 : index
    %10 = vector.load %arg4[%c0_7, %c0_8] : memref<32x2xf32, #tpu.memory_space<vmem>>, vector<32x2xf32>
    %cst_9 = arith.constant dense<0.000000e+00> : vector<2x2xf32>
    %11 = tpu.matmul %9, %10, %cst_9 {dimension_numbers = #tpu.dot_dimension_numbers<[1], [0], [0], [1], [0, 0, 1, 1], [], []>} : vector<2x32xf32>, vector<32x2xf32>, vector<2x2xf32> -> vector<2x2xf32>
    %c0_10 = arith.constant 0 : index
    %c0_11 = arith.constant 0 : index
    %12 = vector.load %arg5[%c0_10, %c0_11] : memref<1x2xf32, #tpu.memory_space<vmem>>, vector<1x2xf32>
    %13 = vector.broadcast %12 : vector<1x2xf32> to vector<2x2xf32>
    %14 = arith.addf %11, %13 : vector<2x2xf32>
    %c0_12 = arith.constant 0 : index
    %c0_13 = arith.constant 0 : index
    %15 = vector.load %arg6[%c0_12, %c0_13] : memref<2x2xf32, #tpu.memory_space<vmem>>, vector<2x2xf32>
    tpu.vector_store %arg6[%c0_12, %c0_13], %14 {strides = array<i32>} : memref<2x2xf32, #tpu.memory_space<vmem>>, vector<2x2xf32>,
    return
  }
  func.func @transform_0(%arg0: i32) -> (i32, i32) {
    %c0_i32 = arith.constant 0 : i32
    %c0_i32_0 = arith.constant 0 : i32
    %c0_i32_1 = arith.constant 0 : i32
    return %c0_i32, %c0_i32_0 : i32, i32
  }
  func.func @transform_1(%arg0: i32) -> (i32, i32) {
    %c0_i32 = arith.constant 0 : i32
    %c0_i32_0 = arith.constant 0 : i32
    %c0_i32_1 = arith.constant 0 : i32
    return %c0_i32, %c0_i32_0 : i32, i32
  }
  func.func @transform_2(%arg0: i32) -> (i32, i32) {
    %c0_i32 = arith.constant 0 : i32
    %c0_i32_0 = arith.constant 0 : i32
    %c0_i32_1 = arith.constant 0 : i32
    return %c0_i32, %c0_i32_0 : i32, i32
  }
  func.func @transform_3(%arg0: i32) -> (i32, i32) {
    %c0_i32 = arith.constant 0 : i32
    %c0_i32_0 = arith.constant 0 : i32
    %c0_i32_1 = arith.constant 0 : i32
    return %c0_i32, %c0_i32_0 : i32, i32
  }
  func.func @transform_4(%arg0: i32) -> (i32, i32) {
    %c0_i32 = arith.constant 0 : i32
    %c0_i32_0 = arith.constant 0 : i32
    %c0_i32_1 = arith.constant 0 : i32
    return %c0_i32, %c0_i32_0 : i32, i32
  }
  func.func @transform_5(%arg0: i32) -> (i32, i32) {
    %c0_i32 = arith.constant 0 : i32
    %c0_i32_0 = arith.constant 0 : i32
    %c0_i32_1 = arith.constant 0 : i32
    return %c0_i32, %c0_i32_0 : i32, i32
  }
}

</mosaic_0001>

<llo_original>
// kernel: tpu_custom_call.1
$region0: #{tpu_custom_call.1}
  #allocation0 [shape = 'u32[]', space=smem, size = 0x4, offset = 0x4, fixed_abs, tag = 'smem constant byte address 0x4 - core index']
  #allocation1 [shape = 'u32[144,128]{1,0:T(1,128)}', space=vmem, size = 0x12000, scoped, tag = 'internal scratch']
  %s0 = inlined_call_operand.vmem [shape: bf16[512,36], index: 0, kind: input, shape index: {}]
  %s1 = inlined_call_operand.vmem [shape: bf16[36,32], index: 1, kind: input, shape index: {}]
  %s2 = inlined_call_operand.vmem [shape: f32[1,32], index: 2, kind: input, shape index: {}]
  %s3 = inlined_call_operand.vmem [shape: f32[32,2], index: 3, kind: input, shape index: {}]
  %s4 = inlined_call_operand.vmem [shape: f32[1,2], index: 4, kind: input, shape index: {}]
  %s5 = inlined_call_operand.hbm [shape: f32[2,2], index: 5, kind: output, shape index: {}]
  %s6 = sld [smem:[#allocation0]]
  $region30: #{tpu_custom_call.1} parent=0
    _
  %s8 = ssub.s32 1, %s6
  %s9 = scalar_select 0, %s8, %s6
  $region1: #{tpu_custom_call.1} parent=0
    #allocation2 [shape = 'u8[1024]{0}', space=vmem, size = 0x400, scoped, tag = 'output window, operand 0, single buffered']
    #allocation3 [shape = 's32[1]{0}', space=sflag, size = 0x4, scoped, tag = 'scoped memory for tpu_custom_call.1']
    %10 = vsyncpa [#allocation3], 0
    // Predicated region
    $region2: #{tpu_custom_call.1} parent=1 // pred_check
      _
    $region3: #{tpu_custom_call.1} parent=1 // pred_check_branch
      %12 = sbr.rel (0) target = $region5
    $region4: #{tpu_custom_call.1} parent=1 // pred_region
      _
    $region5: #{tpu_custom_call.1} parent=1 // pred_fallthru
      _
    // Predicated region
    $region6: #{tpu_custom_call.1} parent=1 // pred_check
      _
    $region7: #{tpu_custom_call.1} parent=1 // pred_check_branch
      %14 = sbr.rel (0) target = $region9
    $region8: #{tpu_custom_call.1} parent=1 // pred_region
      _
    $region9: #{tpu_custom_call.1} parent=1 // pred_fallthru
      _
    // Predicated region
    $region10: #{tpu_custom_call.1} parent=1 // pred_check
      _
    $region11: #{tpu_custom_call.1} parent=1 // pred_check_branch
      %16 = sbr.rel (0) target = $region13
    $region12: #{tpu_custom_call.1} parent=1 // pred_region
      _
    $region13: #{tpu_custom_call.1} parent=1 // pred_fallthru
      _
    // Predicated region
    $region14: #{tpu_custom_call.1} parent=1 // pred_check
      _
    $region15: #{tpu_custom_call.1} parent=1 // pred_check_branch
      %18 = sbr.rel (0) target = $region17
    $region16: #{tpu_custom_call.1} parent=1 // pred_region
      _
    $region17: #{tpu_custom_call.1} parent=1 // pred_fallthru
      _
    // Predicated region
    $region18: #{tpu_custom_call.1} parent=1 // pred_check
      _
    $region19: #{tpu_custom_call.1} parent=1 // pred_check_branch
      %20 = sbr.rel (0) target = $region21
    $region20: #{tpu_custom_call.1} parent=1 // pred_region
      _
    $region21: #{tpu_custom_call.1} parent=1 // pred_fallthru
      _
    %v22 = vld [vmem:[%s0] sm:$0xf]
    %v23 = vld [vmem:[%s0 + $0x4] sm:$0xf]
    %v24 = vld [vmem:[%s0 + $0x8] sm:$0xf]
    %v25 = vld [vmem:[%s0 + $0xc] sm:$0xf]
    %v26 = vld [vmem:[%s0 + $0x10] sm:$0xf]
    %v27 = vld [vmem:[%s0 + $0x14] sm:$0xf]
    %v28 = vld [vmem:[%s0 + $0x18] sm:$0xf]
    %v29 = vld [vmem:[%s0 + $0x1c] sm:$0xf]
    %v30 = vld [vmem:[%s0 + $0x20] sm:$0xf]
    %v31 = vld [vmem:[%s0 + $0x24] sm:$0xf]
    %v32 = vld [vmem:[%s0 + $0x28] sm:$0xf]
    %v33 = vld [vmem:[%s0 + $0x2c] sm:$0xf]
    %v34 = vld [vmem:[%s0 + $0x30] sm:$0xf]
    %v35 = vld [vmem:[%s0 + $0x34] sm:$0xf]
    %v36 = vld [vmem:[%s0 + $0x38] sm:$0xf]
    %v37 = vld [vmem:[%s0 + $0x3c] sm:$0xf]
    %v38 = vld [vmem:[%s0 + $0x40] sm:$0xf]
    %v39 = vld [vmem:[%s0 + $0x44] sm:$0xf]
    %v40 = vld [vmem:[%s0 + $0x48] sm:$0xf]
    %v41 = vld [vmem:[%s0 + $0x4c] sm:$0xf]
    %v42 = vld [vmem:[%s0 + $0x50] sm:$0xf]
    %v43 = vld [vmem:[%s0 + $0x54] sm:$0xf]
    %v44 = vld [vmem:[%s0 + $0x58] sm:$0xf]
    %v45 = vld [vmem:[%s0 + $0x5c] sm:$0xf]
    %v46 = vld [vmem:[%s0 + $0x60] sm:$0xf]
    %v47 = vld [vmem:[%s0 + $0x64] sm:$0xf]
    %v48 = vld [vmem:[%s0 + $0x68] sm:$0xf]
    %v49 = vld [vmem:[%s0 + $0x6c] sm:$0xf]
    %v50 = vld [vmem:[%s0 + $0x70] sm:$0xf]
    %v51 = vld [vmem:[%s0 + $0x74] sm:$0xf]
    %v52 = vld [vmem:[%s0 + $0x78] sm:$0xf]
    %v53 = vld [vmem:[%s0 + $0x7c] sm:$0xf]
    %v54 = vld [vmem:[%s0 + $0x80] sm:$0xf]
    %v55 = vld [vmem:[%s0 + $0x84] sm:$0xf]
    %v56 = vld [vmem:[%s0 + $0x88] sm:$0xf]
    %v57 = vld [vmem:[%s0 + $0x8c] sm:$0xf]
    %v58 = vld [vmem:[%s0 + $0x90] sm:$0xf]
    %v59 = vld [vmem:[%s0 + $0x94] sm:$0xf]
    %v60 = vld [vmem:[%s0 + $0x98] sm:$0xf]
    %v61 = vld [vmem:[%s0 + $0x9c] sm:$0xf]
    %v62 = vld [vmem:[%s0 + $0xa0] sm:$0xf]
    %v63 = vld [vmem:[%s0 + $0xa4] sm:$0xf]
    %v64 = vld [vmem:[%s0 + $0xa8] sm:$0xf]
    %v65 = vld [vmem:[%s0 + $0xac] sm:$0xf]
    %v66 = vld [vmem:[%s0 + $0xb0] sm:$0xf]
    %v67 = vld [vmem:[%s0 + $0xb4] sm:$0xf]
    %v68 = vld [vmem:[%s0 + $0xb8] sm:$0xf]
    %v69 = vld [vmem:[%s0 + $0xbc] sm:$0xf]
    %v70 = vld [vmem:[%s0 + $0xc0] sm:$0xf]
    %v71 = vld [vmem:[%s0 + $0xc4] sm:$0xf]
    %v72 = vld [vmem:[%s0 + $0xc8] sm:$0xf]
    %v73 = vld [vmem:[%s0 + $0xcc] sm:$0xf]
    %v74 = vld [vmem:[%s0 + $0xd0] sm:$0xf]
    %v75 = vld [vmem:[%s0 + $0xd4] sm:$0xf]
    %v76 = vld [vmem:[%s0 + $0xd8] sm:$0xf]
    %v77 = vld [vmem:[%s0 + $0xdc] sm:$0xf]
    %v78 = vld [vmem:[%s0 + $0xe0] sm:$0xf]
    %v79 = vld [vmem:[%s0 + $0xe4] sm:$0xf]
    %v80 = vld [vmem:[%s0 + $0xe8] sm:$0xf]
    %v81 = vld [vmem:[%s0 + $0xec] sm:$0xf]
    %v82 = vld [vmem:[%s0 + $0xf0] sm:$0xf]
    %v83 = vld [vmem:[%s0 + $0xf4] sm:$0xf]
    %v84 = vld [vmem:[%s0 + $0xf8] sm:$0xf]
    %v85 = vld [vmem:[%s0 + $0xfc] sm:$0xf]
    %v86 = vld [vmem:[%s1] sm:$0xf]
    %v87 = vld [vmem:[%s1 + $0x4] sm:$0xf]
    %v88 = vld [vmem:[%s1 + $0x8] sm:$0xf]
    %v89 = vld [vmem:[%s1 + $0xc] sm:$0xf]
    %v90 = vld [vmem:[%s1 + $0x10] sm:$0x3]
    %v91 = vld [vmem:[%s2] sm:$0x1]
    %v93 = vlaneseq
    %v94 = vshrl.u32 %v93, 7
    %v95 = vsub.s32 0, %v94
    %v96 = vrot.slane %v91, %v95
    %v162 = vunpack.c.l.b16 %v22
    %v163 = vunpack.c.l.b16 %v23
    %v164 = vunpack.c.l.b16 %v24
    %v165 = vunpack.c.l.b16 %v25
    %v166 = vunpack.c.l.b16 %v26
    %v167 = vunpack.c.l.b16 %v27
    %v168 = vunpack.c.l.b16 %v28
    %v169 = vunpack.c.l.b16 %v29
    %v170 = vunpack.c.l.b16 %v30
    %v171 = vunpack.c.l.b16 %v31
    %v172 = vunpack.c.l.b16 %v32
    %v173 = vunpack.c.l.b16 %v33
    %v174 = vunpack.c.l.b16 %v34
    %v175 = vunpack.c.l.b16 %v35
    %v176 = vunpack.c.l.b16 %v36
    %v177 = vunpack.c.l.b16 %v37
    %v178 = vunpack.c.l.b16 %v38
    %v179 = vunpack.c.l.b16 %v39
    %v180 = vunpack.c.l.b16 %v40
    %v181 = vunpack.c.l.b16 %v41
    %v182 = vunpack.c.l.b16 %v42
    %v183 = vunpack.c.l.b16 %v43
    %v184 = vunpack.c.l.b16 %v44
    %v185 = vunpack.c.l.b16 %v45
    %v186 = vunpack.c.l.b16 %v46
    %v187 = vunpack.c.l.b16 %v47
    %v188 = vunpack.c.l.b16 %v48
    %v189 = vunpack.c.l.b16 %v49
    %v190 = vunpack.c.l.b16 %v50
    %v191 = vunpack.c.l.b16 %v51
    %v192 = vunpack.c.l.b16 %v52
    %v193 = vunpack.c.l.b16 %v53
    %v194 = vunpack.c.l.b16 %v54
    %v195 = vunpack.c.l.b16 %v55
    %v196 = vunpack.c.l.b16 %v56
    %v197 = vunpack.c.l.b16 %v57
    %v198 = vunpack.c.l.b16 %v58
    %v199 = vunpack.c.l.b16 %v59
    %v200 = vunpack.c.l.b16 %v60
    %v201 = vunpack.c.l.b16 %v61
    %v202 = vunpack.c.l.b16 %v62
    %v203 = vunpack.c.l.b16 %v63
    %v204 = vunpack.c.l.b16 %v64
    %v205 = vunpack.c.l.b16 %v65
    %v206 = vunpack.c.l.b16 %v66
    %v207 = vunpack.c.l.b16 %v67
    %v208 = vunpack.c.l.b16 %v68
    %v209 = vunpack.c.l.b16 %v69
    %v210 = vunpack.c.l.b16 %v70
    %v211 = vunpack.c.l.b16 %v71
    %v212 = vunpack.c.l.b16 %v72
    %v213 = vunpack.c.l.b16 %v73
    %v214 = vunpack.c.l.b16 %v74
    %v215 = vunpack.c.l.b16 %v75
    %v216 = vunpack.c.l.b16 %v76
    %v217 = vunpack.c.l.b16 %v77
    %v218 = vunpack.c.l.b16 %v78
    %v219 = vunpack.c.l.b16 %v79
    %v220 = vunpack.c.l.b16 %v80
    %v221 = vunpack.c.l.b16 %v81
    %v222 = vunpack.c.l.b16 %v82
    %v223 = vunpack.c.l.b16 %v83
    %v224 = vunpack.c.l.b16 %v84
    %v225 = vunpack.c.l.b16 %v85
    %v226 = vpack.c.b16 %v163, %v162
    %v227 = vpack.c.b16 %v165, %v164
    %v228 = vpack.c.b16 %v167, %v166
    %v229 = vpack.c.b16 %v169, %v168
    %v230 = vpack.c.b16 %v171, %v170
    %v231 = vpack.c.b16 %v173, %v172
    %v232 = vpack.c.b16 %v175, %v174
    %v233 = vpack.c.b16 %v177, %v176
    %v234 = vpack.c.b16 %v179, %v178
    %v235 = vpack.c.b16 %v181, %v180
    %v236 = vpack.c.b16 %v183, %v182
    %v237 = vpack.c.b16 %v185, %v184
    %v238 = vpack.c.b16 %v187, %v186
    %v239 = vpack.c.b16 %v189, %v188
    %v240 = vpack.c.b16 %v191, %v190
    %v241 = vpack.c.b16 %v193, %v192
    %v242 = vpack.c.b16 %v195, %v194
    %v243 = vpack.c.b16 %v197, %v196
    %v244 = vpack.c.b16 %v199, %v198
    %v245 = vpack.c.b16 %v201, %v200
    %v246 = vpack.c.b16 %v203, %v202
    %v247 = vpack.c.b16 %v205, %v204
    %v248 = vpack.c.b16 %v207, %v206
    %v249 = vpack.c.b16 %v209, %v208
    %v250 = vpack.c.b16 %v211, %v210
    %v251 = vpack.c.b16 %v213, %v212
    %v252 = vpack.c.b16 %v215, %v214
    %v253 = vpack.c.b16 %v217, %v216
    %v254 = vpack.c.b16 %v219, %v218
    %v255 = vpack.c.b16 %v221, %v220
    %v256 = vpack.c.b16 %v223, %v222
    %v257 = vpack.c.b16 %v225, %v224
    %v263 = vunpack.c.l.b16 %v86
    %v264 = vunpack.c.l.b16 %v87
    %v265 = vunpack.c.l.b16 %v88
    %v266 = vunpack.c.l.b16 %v89
    %v267 = vunpack.c.l.b16 %v90
    %v268 = vpack.c.b16 %v264, %v263
    %v269 = vpack.c.b16 %v266, %v265
    %v270 = vpack.c.b16 %v267, %v267
    %vm273 = vcmask 293888
    %v275 = vsel %vm273, %v226, 0
    %v278 = vsel %vm273, %v227, 0
    %v281 = vsel %vm273, %v228, 0
    %v284 = vsel %vm273, %v229, 0
    %v287 = vsel %vm273, %v230, 0
    %v290 = vsel %vm273, %v231, 0
    %v293 = vsel %vm273, %v232, 0
    %v296 = vsel %vm273, %v233, 0
    %v299 = vsel %vm273, %v234, 0
    %v302 = vsel %vm273, %v235, 0
    %v305 = vsel %vm273, %v236, 0
    %v308 = vsel %vm273, %v237, 0
    %v311 = vsel %vm273, %v238, 0
    %v314 = vsel %vm273, %v239, 0
    %v317 = vsel %vm273, %v240, 0
    %v320 = vsel %vm273, %v241, 0
    %v323 = vsel %vm273, %v242, 0
    %v326 = vsel %vm273, %v243, 0
    %v329 = vsel %vm273, %v244, 0
    %v332 = vsel %vm273, %v245, 0
    %v335 = vsel %vm273, %v246, 0
    %v338 = vsel %vm273, %v247, 0
    %v341 = vsel %vm273, %v248, 0
    %v344 = vsel %vm273, %v249, 0
    %v347 = vsel %vm273, %v250, 0
    %v350 = vsel %vm273, %v251, 0
    %v353 = vsel %vm273, %v252, 0
    %v356 = vsel %vm273, %v253, 0
    %v359 = vsel %vm273, %v254, 0
    %v362 = vsel %vm273, %v255, 0
    %v365 = vsel %vm273, %v256, 0
    %v368 = vsel %vm273, %v257, 0
    %vm370 = vcmask 1041408
    %v372 = vsel %vm370, %v270, 0
    %374 = vmatprep.subr.bf16.mxu0 0
    %375 = vmatpush1.bf16.msra.mxu0 %v268
    %376 = vmatprep.subr.bf16.mxu0 0
    %377 = vmatpush1.bf16.msra.mxu0 %v269
    %378 = vmatprep.subr.bf16.mxu0 0
    %379 = vmatpush1.bf16.msra.mxu0 %v372
    %380 = vmatprep.subr.bf16.mxu0 0
    %381 = vmatpush1.bf16.msra.mxu0 0
    %382 = vmatprep.subr.bf16.mxu0 0
    %383 = vmatpush1.bf16.msra.mxu0 0
    %384 = vmatprep.subr.bf16.mxu0 0
    %385 = vmatpush1.bf16.msra.mxu0 0
    %386 = vmatprep.subr.bf16.mxu0 0
    %387 = vmatpush1.bf16.msra.mxu0 0
    %388 = vmatprep.subr.bf16.mxu0 0
    %389 = vmatpush1.bf16.msra.mxu0 0
    %390 = vmatprep.subr.bf16.mxu0 0
    %391 = vmatpush1.bf16.msra.mxu0 0
    %392 = vmatprep.subr.bf16.mxu0 0
    %393 = vmatpush1.bf16.msra.mxu0 0
    %394 = vmatprep.subr.bf16.mxu0 0
    %395 = vmatpush1.bf16.msra.mxu0 0
    %396 = vmatprep.subr.bf16.mxu0 0
    %397 = vmatpush1.bf16.msra.mxu0 0
    %398 = vmatprep.subr.bf16.mxu0 0
    %399 = vmatpush1.bf16.msra.mxu0 0
    %400 = vmatprep.subr.bf16.mxu0 0
    %401 = vmatpush1.bf16.msra.mxu0 0
    %402 = vmatprep.subr.bf16.mxu0 0
    %403 = vmatpush1.bf16.msra.mxu0 0
    %404 = vmatprep.subr.bf16.mxu0 0
    %405 = vmatpush1.bf16.msra.mxu0 0
    %406 = vmatprep.mubr.bf16.mxu0 0
    %407 = vmatmul.mubr.bf16.gmra.mrb[0].mxu0 %v275
    %v408 = vpop.f32.mrb[0].mxu0
    %v409 = vadd.f32 %v96, %v408
    %v410 = vpop.f32.mrb[0].mxu0
    %v411 = vpop.f32.mrb[0].mxu0
    %v412 = vadd.f32 %v96, %v411
    %v413 = vpop.f32.mrb[0].mxu0
    %414 = vmatprep.mubr.bf16.mxu0 0
    %415 = vmatmul.mubr.bf16.gmra.mrb[0].mxu0 %v278
    %v416 = vpop.f32.mrb[0].mxu0
    %v417 = vadd.f32 %v96, %v416
    %v418 = vpop.f32.mrb[0].mxu0
    %v419 = vpop.f32.mrb[0].mxu0
    %v420 = vadd.f32 %v96, %v419
    %v421 = vpop.f32.mrb[0].mxu0
    %422 = vmatprep.mubr.bf16.mxu0 0
    %423 = vmatmul.mubr.bf16.gmra.mrb[0].mxu0 %v281
    %v424 = vpop.f32.mrb[0].mxu0
    %v425 = vadd.f32 %v96, %v424
    %v426 = vpop.f32.mrb[0].mxu0
    %v427 = vpop.f32.mrb[0].mxu0
    %v428 = vadd.f32 %v96, %v427
    %v429 = vpop.f32.mrb[0].mxu0
    %430 = vmatprep.mubr.bf16.mxu0 0
    %431 = vmatmul.mubr.bf16.gmra.mrb[0].mxu0 %v284
    %v432 = vpop.f32.mrb[0].mxu0
    %v433 = vadd.f32 %v96, %v432
    %v434 = vpop.f32.mrb[0].mxu0
    %v435 = vpop.f32.mrb[0].mxu0
    %v436 = vadd.f32 %v96, %v435
    %v437 = vpop.f32.mrb[0].mxu0
    %438 = vmatprep.mubr.bf16.mxu0 0
    %439 = vmatmul.mubr.bf16.gmra.mrb[0].mxu0 %v287
    %v440 = vpop.f32.mrb[0].mxu0
    %v441 = vadd.f32 %v96, %v440
    %v442 = vpop.f32.mrb[0].mxu0
    %v443 = vpop.f32.mrb[0].mxu0
    %v444 = vadd.f32 %v96, %v443
    %v445 = vpop.f32.mrb[0].mxu0
    %446 = vmatprep.mubr.bf16.mxu0 0
    %447 = vmatmul.mubr.bf16.gmra.mrb[0].mxu0 %v290
    %v448 = vpop.f32.mrb[0].mxu0
    %v449 = vadd.f32 %v96, %v448
    %v450 = vpop.f32.mrb[0].mxu0
    %v451 = vpop.f32.mrb[0].mxu0
    %v452 = vadd.f32 %v96, %v451
    %v453 = vpop.f32.mrb[0].mxu0
    %454 = vmatprep.mubr.bf16.mxu0 0
    %455 = vmatmul.mubr.bf16.gmra.mrb[0].mxu0 %v293
    %v456 = vpop.f32.mrb[0].mxu0
    %v457 = vadd.f32 %v96, %v456
    %v458 = vpop.f32.mrb[0].mxu0
    %v459 = vpop.f32.mrb[0].mxu0
    %v460 = vadd.f32 %v96, %v459
    %v461 = vpop.f32.mrb[0].mxu0
    %462 = vmatprep.mubr.bf16.mxu0 0
    %463 = vmatmul.mubr.bf16.gmra.mrb[0].mxu0 %v296
    %v464 = vpop.f32.mrb[0].mxu0
    %v465 = vadd.f32 %v96, %v464
    %v466 = vpop.f32.mrb[0].mxu0
    %v467 = vpop.f32.mrb[0].mxu0
    %v468 = vadd.f32 %v96, %v467
    %v469 = vpop.f32.mrb[0].mxu0
    %470 = vmatprep.mubr.bf16.mxu0 0
    %471 = vmatmul.mubr.bf16.gmra.mrb[0].mxu0 %v299
    %v472 = vpop.f32.mrb[0].mxu0
    %v473 = vadd.f32 %v96, %v472
    %v474 = vpop.f32.mrb[0].mxu0
    %v475 = vpop.f32.mrb[0].mxu0
    %v476 = vadd.f32 %v96, %v475
    %v477 = vpop.f32.mrb[0].mxu0
    %478 = vmatprep.mubr.bf16.mxu0 0
    %479 = vmatmul.mubr.bf16.gmra.mrb[0].mxu0 %v302
    %v480 = vpop.f32.mrb[0].mxu0
    %v481 = vadd.f32 %v96, %v480
    %v482 = vpop.f32.mrb[0].mxu0
    %v483 = vpop.f32.mrb[0].mxu0
    %v484 = vadd.f32 %v96, %v483
    %v485 = vpop.f32.mrb[0].mxu0
    %486 = vmatprep.mubr.bf16.mxu0 0
    %487 = vmatmul.mubr.bf16.gmra.mrb[0].mxu0 %v305
    %v488 = vpop.f32.mrb[0].mxu0
    %v489 = vadd.f32 %v96, %v488
    %v490 = vpop.f32.mrb[0].mxu0
    %v491 = vpop.f32.mrb[0].mxu0
    %v492 = vadd.f32 %v96, %v491
    %v493 = vpop.f32.mrb[0].mxu0
    %494 = vmatprep.mubr.bf16.mxu0 0
    %495 = vmatmul.mubr.bf16.gmra.mrb[0].mxu0 %v308
    %v496 = vpop.f32.mrb[0].mxu0
    %v497 = vadd.f32 %v96, %v496
    %v498 = vpop.f32.mrb[0].mxu0
    %v499 = vpop.f32.mrb[0].mxu0
    %v500 = vadd.f32 %v96, %v499
    %v501 = vpop.f32.mrb[0].mxu0
    %502 = vmatprep.mubr.bf16.mxu0 0
    %503 = vmatmul.mubr.bf16.gmra.mrb[0].mxu0 %v311
    %v504 = vpop.f32.mrb[0].mxu0
    %v505 = vadd.f32 %v96, %v504
    %v506 = vpop.f32.mrb[0].mxu0
    %v507 = vpop.f32.mrb[0].mxu0
    %v508 = vadd.f32 %v96, %v507
    %v509 = vpop.f32.mrb[0].mxu0
    %510 = vmatprep.mubr.bf16.mxu0 0
    %511 = vmatmul.mubr.bf16.gmra.mrb[0].mxu0 %v314
    %v512 = vpop.f32.mrb[0].mxu0
    %v513 = vadd.f32 %v96, %v512
    %v514 = vpop.f32.mrb[0].mxu0
    %v515 = vpop.f32.mrb[0].mxu0
    %v516 = vadd.f32 %v96, %v515
    %v517 = vpop.f32.mrb[0].mxu0
    %518 = vmatprep.mubr.bf16.mxu0 0
    %519 = vmatmul.mubr.bf16.gmra.mrb[0].mxu0 %v317
    %v520 = vpop.f32.mrb[0].mxu0
    %v521 = vadd.f32 %v96, %v520
    %v522 = vpop.f32.mrb[0].mxu0
    %v523 = vpop.f32.mrb[0].mxu0
    %v524 = vadd.f32 %v96, %v523
    %v525 = vpop.f32.mrb[0].mxu0
    %526 = vmatprep.mubr.bf16.mxu0 0
    %527 = vmatmul.mubr.bf16.gmra.mrb[0].mxu0 %v320
    %v528 = vpop.f32.mrb[0].mxu0
    %v529 = vadd.f32 %v96, %v528
    %v530 = vpop.f32.mrb[0].mxu0
    %v531 = vpop.f32.mrb[0].mxu0
    %v532 = vadd.f32 %v96, %v531
    %v533 = vpop.f32.mrb[0].mxu0
    %534 = vmatprep.mubr.bf16.mxu0 0
    %535 = vmatmul.mubr.bf16.gmra.mrb[0].mxu0 %v323
    %v536 = vpop.f32.mrb[0].mxu0
    %v537 = vadd.f32 %v96, %v536
    %v538 = vpop.f32.mrb[0].mxu0
    %v539 = vpop.f32.mrb[0].mxu0
    %v540 = vadd.f32 %v96, %v539
    %v541 = vpop.f32.mrb[0].mxu0
    %542 = vmatprep.mubr.bf16.mxu0 0
    %543 = vmatmul.mubr.bf16.gmra.mrb[0].mxu0 %v326
    %v544 = vpop.f32.mrb[0].mxu0
    %v545 = vadd.f32 %v96, %v544
    %v546 = vpop.f32.mrb[0].mxu0
    %v547 = vpop.f32.mrb[0].mxu0
    %v548 = vadd.f32 %v96, %v547
    %v549 = vpop.f32.mrb[0].mxu0
    %550 = vmatprep.mubr.bf16.mxu0 0
    %551 = vmatmul.mubr.bf16.gmra.mrb[0].mxu0 %v329
    %v552 = vpop.f32.mrb[0].mxu0
    %v553 = vadd.f32 %v96, %v552
    %v554 = vpop.f32.mrb[0].mxu0
    %v555 = vpop.f32.mrb[0].mxu0
    %v556 = vadd.f32 %v96, %v555
    %v557 = vpop.f32.mrb[0].mxu0
    %558 = vmatprep.mubr.bf16.mxu0 0
    %559 = vmatmul.mubr.bf16.gmra.mrb[0].mxu0 %v332
    %v560 = vpop.f32.mrb[0].mxu0
    %v561 = vadd.f32 %v96, %v560
    %v562 = vpop.f32.mrb[0].mxu0
    %v563 = vpop.f32.mrb[0].mxu0
    %v564 = vadd.f32 %v96, %v563
    %v565 = vpop.f32.mrb[0].mxu0
    %566 = vmatprep.mubr.bf16.mxu0 0
    %567 = vmatmul.mubr.bf16.gmra.mrb[0].mxu0 %v335
    %v568 = vpop.f32.mrb[0].mxu0
    %v569 = vadd.f32 %v96, %v568
    %v570 = vpop.f32.mrb[0].mxu0
    %v571 = vpop.f32.mrb[0].mxu0
    %v572 = vadd.f32 %v96, %v571
    %v573 = vpop.f32.mrb[0].mxu0
    %574 = vmatprep.mubr.bf16.mxu0 0
    %575 = vmatmul.mubr.bf16.gmra.mrb[0].mxu0 %v338
    %v576 = vpop.f32.mrb[0].mxu0
    %v577 = vadd.f32 %v96, %v576
    %v578 = vpop.f32.mrb[0].mxu0
    %v579 = vpop.f32.mrb[0].mxu0
    %v580 = vadd.f32 %v96, %v579
    %v581 = vpop.f32.mrb[0].mxu0
    %582 = vmatprep.mubr.bf16.mxu0 0
    %583 = vmatmul.mubr.bf16.gmra.mrb[0].mxu0 %v341
    %v584 = vpop.f32.mrb[0].mxu0
    %v585 = vadd.f32 %v96, %v584
    %v586 = vpop.f32.mrb[0].mxu0
    %v587 = vpop.f32.mrb[0].mxu0
    %v588 = vadd.f32 %v96, %v587
    %v589 = vpop.f32.mrb[0].mxu0
    %590 = vmatprep.mubr.bf16.mxu0 0
    %591 = vmatmul.mubr.bf16.gmra.mrb[0].mxu0 %v344
    %v592 = vpop.f32.mrb[0].mxu0
    %v593 = vadd.f32 %v96, %v592
    %v594 = vpop.f32.mrb[0].mxu0
    %v595 = vpop.f32.mrb[0].mxu0
    %v596 = vadd.f32 %v96, %v595
    %v597 = vpop.f32.mrb[0].mxu0
    %598 = vmatprep.mubr.bf16.mxu0 0
    %599 = vmatmul.mubr.bf16.gmra.mrb[0].mxu0 %v347
    %v600 = vpop.f32.mrb[0].mxu0
    %v601 = vadd.f32 %v96, %v600
    %v602 = vpop.f32.mrb[0].mxu0
    %v603 = vpop.f32.mrb[0].mxu0
    %v604 = vadd.f32 %v96, %v603
    %v605 = vpop.f32.mrb[0].mxu0
    %606 = vmatprep.mubr.bf16.mxu0 0
    %607 = vmatmul.mubr.bf16.gmra.mrb[0].mxu0 %v350
    %v608 = vpop.f32.mrb[0].mxu0
    %v609 = vadd.f32 %v96, %v608
    %v610 = vpop.f32.mrb[0].mxu0
    %v611 = vpop.f32.mrb[0].mxu0
    %v612 = vadd.f32 %v96, %v611
    %v613 = vpop.f32.mrb[0].mxu0
    %614 = vmatprep.mubr.bf16.mxu0 0
    %615 = vmatmul.mubr.bf16.gmra.mrb[0].mxu0 %v353
    %v616 = vpop.f32.mrb[0].mxu0
    %v617 = vadd.f32 %v96, %v616
    %v618 = vpop.f32.mrb[0].mxu0
    %v619 = vpop.f32.mrb[0].mxu0
    %v620 = vadd.f32 %v96, %v619
    %v621 = vpop.f32.mrb[0].mxu0
    %622 = vmatprep.mubr.bf16.mxu0 0
    %623 = vmatmul.mubr.bf16.gmra.mrb[0].mxu0 %v356
    %v624 = vpop.f32.mrb[0].mxu0
    %v625 = vadd.f32 %v96, %v624
    %v626 = vpop.f32.mrb[0].mxu0
    %v627 = vpop.f32.mrb[0].mxu0
    %v628 = vadd.f32 %v96, %v627
    %v629 = vpop.f32.mrb[0].mxu0
    %630 = vmatprep.mubr.bf16.mxu0 0
    %631 = vmatmul.mubr.bf16.gmra.mrb[0].mxu0 %v359
    %v632 = vpop.f32.mrb[0].mxu0
    %v633 = vadd.f32 %v96, %v632
    %v634 = vpop.f32.mrb[0].mxu0
    %v635 = vpop.f32.mrb[0].mxu0
    %v636 = vadd.f32 %v96, %v635
    %v637 = vpop.f32.mrb[0].mxu0
    %638 = vmatprep.mubr.bf16.mxu0 0
    %639 = vmatmul.mubr.bf16.gmra.mrb[0].mxu0 %v362
    %v640 = vpop.f32.mrb[0].mxu0
    %v641 = vadd.f32 %v96, %v640
    %v642 = vpop.f32.mrb[0].mxu0
    %v643 = vpop.f32.mrb[0].mxu0
    %v644 = vadd.f32 %v96, %v643
    %v645 = vpop.f32.mrb[0].mxu0
    %646 = vmatprep.mubr.bf16.mxu0 0
    %647 = vmatmul.mubr.bf16.gmra.mrb[0].mxu0 %v365
    %v648 = vpop.f32.mrb[0].mxu0
    %v649 = vadd.f32 %v96, %v648
    %v650 = vpop.f32.mrb[0].mxu0
    %v651 = vpop.f32.mrb[0].mxu0
    %v652 = vadd.f32 %v96, %v651
    %v653 = vpop.f32.mrb[0].mxu0
    %654 = vmatprep.mubr.bf16.mxu0 0
    %655 = vmatmul.mubr.bf16.gmra.mrb[0].mxu0 %v368
    %v656 = vpop.f32.mrb[0].mxu0
    %v657 = vadd.f32 %v96, %v656
    %v658 = vpop.f32.mrb[0].mxu0
    %v659 = vpop.f32.mrb[0].mxu0
    %v660 = vadd.f32 %v96, %v659
    %v661 = vpop.f32.mrb[0].mxu0
    %662 = vdwg.mxu0
    %v663 = vmax.f32 %v409, 0.0
    %v664 = vmax.f32 %v412, 0.0
    %v665 = vmax.f32 %v417, 0.0
    %v666 = vmax.f32 %v420, 0.0
    %v667 = vmax.f32 %v425, 0.0
    %v668 = vmax.f32 %v428, 0.0
    %v669 = vmax.f32 %v433, 0.0
    %v670 = vmax.f32 %v436, 0.0
    %v671 = vmax.f32 %v441, 0.0
    %v672 = vmax.f32 %v444, 0.0
    %v673 = vmax.f32 %v449, 0.0
    %v674 = vmax.f32 %v452, 0.0
    %v675 = vmax.f32 %v457, 0.0
    %v676 = vmax.f32 %v460, 0.0
    %v677 = vmax.f32 %v465, 0.0
    %v678 = vmax.f32 %v468, 0.0
    %v679 = vmax.f32 %v473, 0.0
    %v680 = vmax.f32 %v476, 0.0
    %v681 = vmax.f32 %v481, 0.0
    %v682 = vmax.f32 %v484, 0.0
    %v683 = vmax.f32 %v489, 0.0
    %v684 = vmax.f32 %v492, 0.0
    %v685 = vmax.f32 %v497, 0.0
    %v686 = vmax.f32 %v500, 0.0
    %v687 = vmax.f32 %v505, 0.0
    %v688 = vmax.f32 %v508, 0.0
    %v689 = vmax.f32 %v513, 0.0
    %v690 = vmax.f32 %v516, 0.0
    %v691 = vmax.f32 %v521, 0.0
    %v692 = vmax.f32 %v524, 0.0
    %v693 = vmax.f32 %v529, 0.0
    %v694 = vmax.f32 %v532, 0.0
    %v695 = vmax.f32 %v537, 0.0
    %v696 = vmax.f32 %v540, 0.0
    %v697 = vmax.f32 %v545, 0.0
    %v698 = vmax.f32 %v548, 0.0
    %v699 = vmax.f32 %v553, 0.0
    %v700 = vmax.f32 %v556, 0.0
    %v701 = vmax.f32 %v561, 0.0
    %v702 = vmax.f32 %v564, 0.0
    %v703 = vmax.f32 %v569, 0.0
    %v704 = vmax.f32 %v572, 0.0
    %v705 = vmax.f32 %v577, 0.0
    %v706 = vmax.f32 %v580, 0.0
    %v707 = vmax.f32 %v585, 0.0
    %v708 = vmax.f32 %v588, 0.0
    %v709 = vmax.f32 %v593, 0.0
    %v710 = vmax.f32 %v596, 0.0
    %v711 = vmax.f32 %v601, 0.0
    %v712 = vmax.f32 %v604, 0.0
    %v713 = vmax.f32 %v609, 0.0
    %v714 = vmax.f32 %v612, 0.0
    %v715 = vmax.f32 %v617, 0.0
    %v716 = vmax.f32 %v620, 0.0
    %v717 = vmax.f32 %v625, 0.0
    %v718 = vmax.f32 %v628, 0.0
    %v719 = vmax.f32 %v633, 0.0
    %v720 = vmax.f32 %v636, 0.0
    %v721 = vmax.f32 %v641, 0.0
    %v722 = vmax.f32 %v644, 0.0
    %v723 = vmax.f32 %v649, 0.0
    %v724 = vmax.f32 %v652, 0.0
    %v725 = vmax.f32 %v657, 0.0
    %v726 = vmax.f32 %v660, 0.0
    %vm727 = vcmask 261120
    %v728 = vsel %vm727, %v663, 0.0
    %v729 = vsel %vm727, %v664, 0.0
    %v730 = vadd.f32 %v728, %v729
    %v731 = vsel %vm727, %v665, 0.0
    %v732 = vadd.f32 %v730, %v731
    %v733 = vsel %vm727, %v666, 0.0
    %v734 = vadd.f32 %v732, %v733
    %v735 = vsel %vm727, %v667, 0.0
    %v736 = vadd.f32 %v734, %v735
    %v737 = vsel %vm727, %v668, 0.0
    %v738 = vadd.f32 %v736, %v737
    %v739 = vsel %vm727, %v669, 0.0
    %v740 = vadd.f32 %v738, %v739
    %v741 = vsel %vm727, %v670, 0.0
    %v742 = vadd.f32 %v740, %v741
    %v743 = vsel %vm727, %v671, 0.0
    %v744 = vadd.f32 %v742, %v743
    %v745 = vsel %vm727, %v672, 0.0
    %v746 = vadd.f32 %v744, %v745
    %v747 = vsel %vm727, %v673, 0.0
    %v748 = vadd.f32 %v746, %v747
    %v749 = vsel %vm727, %v674, 0.0
    %v750 = vadd.f32 %v748, %v749
    %v751 = vsel %vm727, %v675, 0.0
    %v752 = vadd.f32 %v750, %v751
    %v753 = vsel %vm727, %v676, 0.0
    %v754 = vadd.f32 %v752, %v753
    %v755 = vsel %vm727, %v677, 0.0
    %v756 = vadd.f32 %v754, %v755
    %v757 = vsel %vm727, %v678, 0.0
    %v758 = vadd.f32 %v756, %v757
    %v759 = vsel %vm727, %v679, 0.0
    %v760 = vadd.f32 %v758, %v759
    %v761 = vsel %vm727, %v680, 0.0
    %v762 = vadd.f32 %v760, %v761
    %v763 = vsel %vm727, %v681, 0.0
    %v764 = vadd.f32 %v762, %v763
    %v765 = vsel %vm727, %v682, 0.0
    %v766 = vadd.f32 %v764, %v765
    %v767 = vsel %vm727, %v683, 0.0
    %v768 = vadd.f32 %v766, %v767
    %v769 = vsel %vm727, %v684, 0.0
    %v770 = vadd.f32 %v768, %v769
    %v771 = vsel %vm727, %v685, 0.0
    %v772 = vadd.f32 %v770, %v771
    %v773 = vsel %vm727, %v686, 0.0
    %v774 = vadd.f32 %v772, %v773
    %v775 = vsel %vm727, %v687, 0.0
    %v776 = vadd.f32 %v774, %v775
    %v777 = vsel %vm727, %v688, 0.0
    %v778 = vadd.f32 %v776, %v777
    %v779 = vsel %vm727, %v689, 0.0
    %v780 = vadd.f32 %v778, %v779
    %v781 = vsel %vm727, %v690, 0.0
    %v782 = vadd.f32 %v780, %v781
    %v783 = vsel %vm727, %v691, 0.0
    %v784 = vadd.f32 %v782, %v783
    %v785 = vsel %vm727, %v692, 0.0
    %v786 = vadd.f32 %v784, %v785
    %v787 = vsel %vm727, %v693, 0.0
    %v788 = vadd.f32 %v786, %v787
    %v789 = vsel %vm727, %v694, 0.0
    %v790 = vadd.f32 %v788, %v789
    %v791 = vrot.slane %v790, 4
    %v792 = vadd.f32 %v790, %v791
    %v793 = vrot.slane %v792, 2
    %v794 = vadd.f32 %v792, %v793
    %v795 = vrot.slane %v794, 1
    %v796 = vadd.f32 %v794, %v795
    %v797 = vsel %vm727, %v695, 0.0
    %v798 = vsel %vm727, %v696, 0.0
    %v799 = vadd.f32 %v797, %v798
    %v800 = vsel %vm727, %v697, 0.0
    %v801 = vadd.f32 %v799, %v800
    %v802 = vsel %vm727, %v698, 0.0
    %v803 = vadd.f32 %v801, %v802
    %v804 = vsel %vm727, %v699, 0.0
    %v805 = vadd.f32 %v803, %v804
    %v806 = vsel %vm727, %v700, 0.0
    %v807 = vadd.f32 %v805, %v806
    %v808 = vsel %vm727, %v701, 0.0
    %v809 = vadd.f32 %v807, %v808
    %v810 = vsel %vm727, %v702, 0.0
    %v811 = vadd.f32 %v809, %v810
    %v812 = vsel %vm727, %v703, 0.0
    %v813 = vadd.f32 %v811, %v812
    %v814 = vsel %vm727, %v704, 0.0
    %v815 = vadd.f32 %v813, %v814
    %v816 = vsel %vm727, %v705, 0.0
    %v817 = vadd.f32 %v815, %v816
    %v818 = vsel %vm727, %v706, 0.0
    %v819 = vadd.f32 %v817, %v818
    %v820 = vsel %vm727, %v707, 0.0
    %v821 = vadd.f32 %v819, %v820
    %v822 = vsel %vm727, %v708, 0.0
    %v823 = vadd.f32 %v821, %v822
    %v824 = vsel %vm727, %v709, 0.0
    %v825 = vadd.f32 %v823, %v824
    %v826 = vsel %vm727, %v710, 0.0
    %v827 = vadd.f32 %v825, %v826
    %v828 = vsel %vm727, %v711, 0.0
    %v829 = vadd.f32 %v827, %v828
    %v830 = vsel %vm727, %v712, 0.0
    %v831 = vadd.f32 %v829, %v830
    %v832 = vsel %vm727, %v713, 0.0
    %v833 = vadd.f32 %v831, %v832
    %v834 = vsel %vm727, %v714, 0.0
    %v835 = vadd.f32 %v833, %v834
    %v836 = vsel %vm727, %v715, 0.0
    %v837 = vadd.f32 %v835, %v836
    %v838 = vsel %vm727, %v716, 0.0
    %v839 = vadd.f32 %v837, %v838
    %v840 = vsel %vm727, %v717, 0.0
    %v841 = vadd.f32 %v839, %v840
    %v842 = vsel %vm727, %v718, 0.0
    %v843 = vadd.f32 %v841, %v842
    %v844 = vsel %vm727, %v719, 0.0
    %v845 = vadd.f32 %v843, %v844
    %v846 = vsel %vm727, %v720, 0.0
    %v847 = vadd.f32 %v845, %v846
    %v848 = vsel %vm727, %v721, 0.0
    %v849 = vadd.f32 %v847, %v848
    %v850 = vsel %vm727, %v722, 0.0
    %v851 = vadd.f32 %v849, %v850
    %v852 = vsel %vm727, %v723, 0.0
    %v853 = vadd.f32 %v851, %v852
    %v854 = vsel %vm727, %v724, 0.0
    %v855 = vadd.f32 %v853, %v854
    %v856 = vsel %vm727, %v725, 0.0
    %v857 = vadd.f32 %v855, %v856
    %v858 = vsel %vm727, %v726, 0.0
    %v859 = vadd.f32 %v857, %v858
    %v860 = vrot.slane %v859, 4
    %v861 = vadd.f32 %v859, %v860
    %v862 = vrot.slane %v861, 2
    %v863 = vadd.f32 %v861, %v862
    %v864 = vrot.slane %v863, 1
    %v865 = vadd.f32 %v863, %v864
    %v866 = vld [vmem:[%s3] sm:$0xff]
    %v867 = vld [vmem:[%s3 + $0x8] sm:$0xff]
    %v868 = vld [vmem:[%s3 + $0x10] sm:$0xff]
    %v869 = vld [vmem:[%s3 + $0x18] sm:$0xff]
    %v870 = vld [vmem:[%s4] sm:$0x1]
    %v872 = vlaneseq
    %v873 = vshrl.u32 %v872, 7
    %v874 = vsub.s32 0, %v873
    %v875 = vrot.slane %v870, %v874
    %vm879 = vcmask 1041409
    %v880 = vsel %vm879, %v865, %v796
    %v881 = vsel %vm727, %v880, 0
    %883 = vmatprep.subr.mxu0 0.0
    %884 = vmatpush1.msra.mxu0 %v866
    %885 = vmatprep.subr.mxu0 0.0
    %886 = vmatpush1.msra.mxu0 %v867
    %887 = vmatprep.subr.mxu0 0.0
    %888 = vmatpush1.msra.mxu0 %v868
    %889 = vmatprep.subr.mxu0 0.0
    %890 = vmatpush1.msra.mxu0 %v869
    %891 = vmatprep.subr.mxu0 0.0
    %892 = vmatpush1.msra.mxu0 0.0
    %893 = vmatprep.subr.mxu0 0.0
    %894 = vmatpush1.msra.mxu0 0.0
    %895 = vmatprep.subr.mxu0 0.0
    %896 = vmatpush1.msra.mxu0 0.0
    %897 = vmatprep.subr.mxu0 0.0
    %898 = vmatpush1.msra.mxu0 0.0
    %899 = vmatprep.subr.mxu0 0.0
    %900 = vmatpush1.msra.mxu0 0.0
    %901 = vmatprep.subr.mxu0 0.0
    %902 = vmatpush1.msra.mxu0 0.0
    %903 = vmatprep.subr.mxu0 0.0
    %904 = vmatpush1.msra.mxu0 0.0
    %905 = vmatprep.subr.mxu0 0.0
    %906 = vmatpush1.msra.mxu0 0.0
    %907 = vmatprep.subr.mxu0 0.0
    %908 = vmatpush1.msra.mxu0 0.0
    %909 = vmatprep.subr.mxu0 0.0
    %910 = vmatpush1.msra.mxu0 0.0
    %911 = vmatprep.subr.mxu0 0.0
    %912 = vmatpush1.msra.mxu0 0.0
    %913 = vmatprep.subr.mxu0 0.0
    %914 = vmatpush1.msra.mxu0 0.0
    %915 = vmatprep.subr.mxu0 0.0
    %916 = vmatpush1.msra.mxu0 0.0
    %917 = vmatprep.subr.mxu0 0.0
    %918 = vmatpush1.msra.mxu0 0.0
    %919 = vmatprep.subr.mxu0 0.0
    %920 = vmatpush1.msra.mxu0 0.0
    %921 = vmatprep.subr.mxu0 0.0
    %922 = vmatpush1.msra.mxu0 0.0
    %923 = vmatprep.subr.mxu0 0.0
    %924 = vmatpush1.msra.mxu0 0.0
    %925 = vmatprep.subr.mxu0 0.0
    %926 = vmatpush1.msra.mxu0 0.0
    %927 = vmatprep.subr.mxu0 0.0
    %928 = vmatpush1.msra.mxu0 0.0
    %929 = vmatprep.subr.mxu0 0.0
    %930 = vmatpush1.msra.mxu0 0.0
    %931 = vmatprep.subr.mxu0 0.0
    %932 = vmatpush1.msra.mxu0 0.0
    %933 = vmatprep.subr.mxu0 0.0
    %934 = vmatpush1.msra.mxu0 0.0
    %935 = vmatprep.subr.mxu0 0.0
    %936 = vmatpush1.msra.mxu0 0.0
    %937 = vmatprep.subr.mxu0 0.0
    %938 = vmatpush1.msra.mxu0 0.0
    %939 = vmatprep.subr.mxu0 0.0
    %940 = vmatpush1.msra.mxu0 0.0
    %941 = vmatprep.subr.mxu0 0.0
    %942 = vmatpush1.msra.mxu0 0.0
    %943 = vmatprep.subr.mxu0 0.0
    %944 = vmatpush1.msra.mxu0 0.0
    %945 = vmatprep.subr.mxu0 0.0
    %946 = vmatpush1.msra.mxu0 0.0
    %947 = vmatprep.mubr.f32.mxu0 0.0
    %948 = vmatmul.mubr.f32.gmra.mrb[0].mxu0 %v881
    %v949 = vpop.f32.mrb[0].mxu0
    %v950 = vadd.f32 %v875, %v949
    %v951 = vpop.f32.mrb[0].mxu0
    %952 = vdwg.mxu0
    %vm953 = vcmask 9216
    %954 = vst.msk [vmem:[#allocation2] sm:$0x3] %vm953, %v950
    // Predicated region
    $region22: #{tpu_custom_call.1} parent=1 // pred_check
      _
    $region23: #{tpu_custom_call.1} parent=1 // pred_check_branch
      %956 = sbr.rel (0) target = $region25
    $region24: #{tpu_custom_call.1} parent=1 // pred_region
      %s958 = ssub.s32 32, 32
      %959 = vsyncadd [#allocation3], %s958
      %s961 = sshll.u32 [#allocation2], 4
      %s962 = int_to_ptr.vmem [resolvable:$true] %s961
      %964 = dma.vmem_to_hbm [thread:$0]  %s962, 32, %s5, [#allocation3]
    $region25: #{tpu_custom_call.1} parent=1 // pred_fallthru
      _
    // Predicated region
    $region26: #{tpu_custom_call.1} parent=1 // pred_check
      _
    $region27: #{tpu_custom_call.1} parent=1 // pred_check_branch
      %966 = sbr.rel (0) target = $region29
    $region28: #{tpu_custom_call.1} parent=1 // pred_region
      %967 = dma.done [#allocation3], 32
    $region29: #{tpu_custom_call.1} parent=1 // pred_fallthru
      _
    %968 = vsyncpa [#allocation3], 1

</llo_original>
